<compile_context>
chip_gen: v5e
topology: v5e:2x2
jax: 0.10.0
libtpu: 0.0.40
codegen_flags: <defaults>
</compile_context>

<pallas_src>
import functools

import jax
import jax.numpy as jnp
from jax.experimental import pallas as pl
from jax.experimental.pallas import tpu as pltpu

VMEM = pltpu.MemorySpace.VMEM
NF = 32  # channel width of the COAST body (fixed by the reference model)


def _vspec():
    return pl.BlockSpec(memory_space=VMEM)


# --------------------------------------------------------------------------
# one-time Pallas kernels: CS setup and the shared residual-scale MLP
# --------------------------------------------------------------------------

def _setup_kernel(x_ref, phi_ref, ptp_ref, ptb_ref):
    """PhiTPhi = Phi^T Phi ; PhiTb = (x Phi^T) Phi   (no HBM Phi.T)."""
    phi = phi_ref[...]                                   # [M, Npad]
    phiT = phi.T                                         # in-VMEM transpose
    phix = jnp.dot(x_ref[...], phiT, preferred_element_type=jnp.float32)
    ptp_ref[...] = jnp.dot(phiT, phi, preferred_element_type=jnp.float32)
    ptb_ref[...] = jnp.dot(phix, phi, preferred_element_type=jnp.float32)


@jax.jit
def cs_setup(batch_x, Phi_pad):
    nb, Npad = batch_x.shape
    return pl.pallas_call(
        _setup_kernel,
        out_shape=(jax.ShapeDtypeStruct((Npad, Npad), jnp.float32),
                   jax.ShapeDtypeStruct((nb, Npad), jnp.float32)),
        in_specs=[_vspec(), _vspec()],
        out_specs=(_vspec(), _vspec()),
    )(batch_x, Phi_pad)


def _mlp_kernel(c_ref, w1_ref, b1_ref, w2_ref, b2_ref, o_ref):
    # Linear(3,nf) -> ReLU -> Linear(nf,nf), batched over ALL iterations
    h = jnp.dot(c_ref[...], w1_ref[...],
                preferred_element_type=jnp.float32) + b1_ref[...]
    h = jnp.maximum(h, 0.0)
    o_ref[...] = jnp.dot(h, w2_ref[...],
                         preferred_element_type=jnp.float32) + b2_ref[...]


@jax.jit
def res_scale_mlp(cond_all, w1, b1, w2, b2):
    T = cond_all.shape[0]
    nf = w2.shape[1]
    return pl.pallas_call(
        _mlp_kernel,
        out_shape=jax.ShapeDtypeStruct((T, nf), jnp.float32),
        in_specs=[_vspec()] * 5,
        out_specs=_vspec(),
    )(cond_all, w1, b1.reshape(1, -1), w2, b2.reshape(1, -1))


# --------------------------------------------------------------------------
# fused all-iterations kernel (grid axis = iteration index)
# --------------------------------------------------------------------------

def _fused_iter_kernel(lid_ref,
                       ptp_ref, ptb_ref, lam_ref, alpha_ref, mask_ref,
                       head_w_ref, head_b_ref,
                       w1_ref, b1_ref, w2_ref, b2_ref,
                       tail_w_ref, tail_b_ref,
                       out_ref,
                       x_ref, img_ref, act_ref, actb_ref, tmpb_ref, col_ref,
                       *, H, W, bh, bw, nbh, nbw):
    """One full BasicBlock iteration per grid step.

    Activation layout: [C, Lbuf] with Lbuf = Hp*Wp + 2*(Wp+1); the zero-padded
    Hp x Wp image is flattened at lane offset Wp+1 so the nine 3x3 taps are
    plain static lane-offset slices of width Hp*Wp.  The padding ring is kept
    at zero with `mask`; halo margins are zeroed once at t == 0.
    """
    del lid_ref  # only used by the index_maps
    t = pl.program_id(0)
    Hp, Wp = H + 2, W + 2
    Lp = Hp * Wp
    base = Wp + 1
    nf = act_ref.shape[0]
    ncpmb = w1_ref.shape[0]

    @pl.when(t == 0)
    def _init():
        # x starts as PhiTb; padding rings / halo margins must start at zero
        x_ref[...] = ptb_ref[...]
        img_ref[...] = jnp.zeros_like(img_ref)
        act_ref[...] = jnp.zeros_like(act_ref)
        actb_ref[...] = jnp.zeros_like(actb_ref)
        tmpb_ref[...] = jnp.zeros_like(tmpb_ref)

    # ---- gradient step: x <- x - lam * (x @ PhiTPhi - PhiTb) ---------------
    lam = lam_ref[...]                                            # [1, 1]
    xp = jnp.dot(x_ref[...], ptp_ref[...],
                 preferred_element_type=jnp.float32)
    x_ref[...] = x_ref[...] - lam * (xp - ptb_ref[...])

    # ---- unblockify: block vectors -> padded flat image (interior only) ----
    for ib in range(nbh):
        for jb in range(nbw):
            blk = ib * nbw + jb
            for r in range(bh):
                dst = base + (ib * bh + r + 1) * Wp + jb * bw + 1
                img_ref[:, dst:dst + bw] = x_ref[blk:blk + 1,
                                                 r * bw:(r + 1) * bw]

    mask_b = mask_ref[...] > 0.5                                  # [1, Lp]
    alpha = alpha_ref[...]                                        # [nf, 1]

    # ---- head conv (1 -> nf): 9 broadcast FMAs on the VPU ------------------
    acc = jnp.zeros((nf, Lp), jnp.float32)
    for dy in range(3):
        for dx in range(3):
            tap = dy * 3 + dx
            v = img_ref[:, dy * Wp + dx: dy * Wp + dx + Lp]       # [1, Lp]
            acc = acc + head_w_ref[:, tap:tap + 1] * v            # [nf, Lp]
    content = jnp.where(mask_b, acc + head_b_ref[...], 0.0)
    act_ref[:, base:base + Lp] = content
    actb_ref[:, base:base + Lp] = content.astype(jnp.bfloat16)

    def im2col(src_ref):
        # [9*nf, Lp] bf16 column matrix; pure copies (source is already bf16)
        for dy in range(3):
            for dx in range(3):
                tap = dy * 3 + dx
                col_ref[tap * nf:(tap + 1) * nf, :] = (
                    src_ref[:, dy * Wp + dx: dy * Wp + dx + Lp])
        return col_ref[...]

    # ---- 3x CPMB: content += alpha * conv2(relu(conv1(content))) ----------
    for i in range(ncpmb):
        col = im2col(actb_ref)
        h = jnp.dot(w1_ref[i], col,
                    preferred_element_type=jnp.float32) + b1_ref[i]
        h = jnp.where(mask_b, jnp.maximum(h, 0.0), 0.0)
        tmpb_ref[:, base:base + Lp] = h.astype(jnp.bfloat16)

        col = im2col(tmpb_ref)
        o = jnp.dot(w2_ref[i], col,
                    preferred_element_type=jnp.float32) + b2_ref[i]
        new_content = (act_ref[:, base:base + Lp]
                       + jnp.where(mask_b, o, 0.0) * alpha)       # f32 carry
        act_ref[:, base:base + Lp] = new_content
        actb_ref[:, base:base + Lp] = new_content.astype(jnp.bfloat16)

    # ---- tail conv (nf -> 1) + residual with the post-grad-step image -----
    col = im2col(actb_ref)
    tl = jnp.dot(tail_w_ref[...], col,
                 preferred_element_type=jnp.float32) + tail_b_ref[...]
    out_ref[...] = img_ref[:, base:base + Lp] + tl                # [1, Lp]

    # ---- blockify x_pred back into x (interior lanes only) ----------------
    for ib in range(nbh):
        for jb in range(nbw):
            blk = ib * nbw + jb
            for r in range(bh):
                src = (ib * bh + r + 1) * Wp + jb * bw + 1
                x_ref[blk:blk + 1, r * bw:(r + 1) * bw] = (
                    out_ref[:, src:src + bw])


@functools.partial(jax.jit, static_argnames=("H", "W", "bh", "bw"))
def run_coast_iterations(layer_ids, PhiTPhi, PhiTb, lambdas, alphas, mask, sw,
                         *, H, W, bh, bw):
    T = int(layer_ids.shape[0])
    nb, Npad = PhiTb.shape
    nbh, nbw = H // bh, W // bw
    Hp, Wp = H + 2, W + 2
    Lp = Hp * Wp
    Lbuf = Lp + 2 * (Wp + 1)
    nf = sw["head_w"].shape[1]
    ncp = sw["w1"].shape[1]

    kernel = functools.partial(_fused_iter_kernel, H=H, W=W, bh=bh, bw=bw,
                               nbh=nbh, nbw=nbw)

    grid_spec = pltpu.PrefetchScalarGridSpec(
        num_scalar_prefetch=1,                 # layer_ids -> SMEM
        grid=(T,),
        in_specs=[
            # VMEM-resident across all iterations (constant block index):
            pl.BlockSpec((Npad, Npad), lambda t, lid: (0, 0)),             # PhiTPhi
            pl.BlockSpec((nb, Npad), lambda t, lid: (0, 0)),               # PhiTb
            # per-iteration scalars / vectors:
            pl.BlockSpec((None, 1, 1), lambda t, lid: (t, 0, 0)),          # lambda[t]
            pl.BlockSpec((None, nf, 1), lambda t, lid: (t, 0, 0)),         # alpha[t]
            pl.BlockSpec((1, Lp), lambda t, lid: (0, 0)),                  # interior mask
            # per-layer conv weights, selected by the prefetched layer id:
            pl.BlockSpec((None, nf, 9), lambda t, lid: (lid[t], 0, 0)),    # head_w
            pl.BlockSpec((None, nf, 1), lambda t, lid: (lid[t], 0, 0)),    # head_b
            pl.BlockSpec((None, ncp, nf, 9 * nf),
                         lambda t, lid: (lid[t], 0, 0, 0)),                # w1
            pl.BlockSpec((None, ncp, nf, 1),
                         lambda t, lid: (lid[t], 0, 0, 0)),                # b1
            pl.BlockSpec((None, ncp, nf, 9 * nf),
                         lambda t, lid: (lid[t], 0, 0, 0)),                # w2
            pl.BlockSpec((None, ncp, nf, 1),
                         lambda t, lid: (lid[t], 0, 0, 0)),                # b2
            pl.BlockSpec((None, 1, 9 * nf), lambda t, lid: (lid[t], 0, 0)),  # tail_w
            pl.BlockSpec((None, 1, 1), lambda t, lid: (lid[t], 0, 0)),       # tail_b
        ],
        out_specs=pl.BlockSpec((None, 1, Lp), lambda t, lid: (t, 0, 0)),
        scratch_shapes=[
            pltpu.VMEM((nb, Npad), jnp.float32),      # x (carried block vectors)
            pltpu.VMEM((1, Lbuf), jnp.float32),       # padded flat image + halo
            pltpu.VMEM((nf, Lbuf), jnp.float32),      # f32 residual carry
            pltpu.VMEM((nf, Lbuf), jnp.bfloat16),     # bf16 carry copy (im2col src)
            pltpu.VMEM((nf, Lbuf), jnp.bfloat16),     # bf16 ReLU intermediate
            pltpu.VMEM((9 * nf, Lp), jnp.bfloat16),   # im2col matrix
        ],
    )

    return pl.pallas_call(
        kernel,
        out_shape=jax.ShapeDtypeStruct((T, 1, Lp), jnp.float32),
        grid_spec=grid_spec,
        compiler_params=pltpu.CompilerParams(
            dimension_semantics=("arbitrary",)),
    )(layer_ids, PhiTPhi, PhiTb, lambdas, alphas, mask,
      sw["head_w"], sw["head_b"], sw["w1"], sw["b1"], sw["w2"], sw["b2"],
      sw["tail_w"], sw["tail_b"])


# --------------------------------------------------------------------------
# parameters (PyTorch conv layout, converted once to matmul form & stacked)
# --------------------------------------------------------------------------

def init_params(key, LayerNo, nf=NF):
    keys = iter(jax.random.split(key, 8 + LayerNo * 32))

    def rnd(shape, scale):
        return jax.random.normal(next(keys), shape, jnp.float32) * scale

    params = {
        "mlp_w1": rnd((3, nf), 0.3), "mlp_b1": rnd((nf,), 0.1),
        "mlp_w2": rnd((nf, nf), 0.1), "mlp_b2": rnd((nf,), 0.1),
        "layers": [],
    }
    for _ in range(LayerNo):
        layer = {
            "lambda": jnp.array(0.5, jnp.float32),
            "head_w": rnd((nf, 1, 3, 3), 0.2), "head_b": rnd((nf,), 0.05),
            "tail_w": rnd((1, nf, 3, 3), 0.05), "tail_b": rnd((1,), 0.05),
            "cpmb": [{"w1": rnd((nf, nf, 3, 3), 0.05), "b1": rnd((nf,), 0.05),
                      "w2": rnd((nf, nf, 3, 3), 0.05), "b2": rnd((nf,), 0.05)}
                     for _ in range(3)],
        }
        params["layers"].append(layer)
    return params


def _conv_w_to_mat(w):
    """[Cout, Cin, 3, 3] -> [Cout, 9*Cin] with column index (dy*3+dx)*Cin+cin."""
    Cout, Cin = w.shape[0], w.shape[1]
    return jnp.transpose(w, (0, 2, 3, 1)).reshape(Cout, 9 * Cin)


def stack_layer_params(layers, nf=NF):
    def per_cpmb_w(l, name):
        return jnp.stack([_conv_w_to_mat(c[name]) for c in l["cpmb"]])

    def per_cpmb_b(l, name):
        return jnp.stack([c[name].reshape(nf, 1) for c in l["cpmb"]])

    return {
        "head_w": jnp.stack([_conv_w_to_mat(l["head_w"]) for l in layers]),   # [L,nf,9] f32
        "head_b": jnp.stack([l["head_b"].reshape(nf, 1) for l in layers]),    # [L,nf,1]
        "w1": jnp.stack([per_cpmb_w(l, "w1") for l in layers]
                        ).astype(jnp.bfloat16),                               # [L,3,nf,9nf]
        "b1": jnp.stack([per_cpmb_b(l, "b1") for l in layers]),               # [L,3,nf,1]
        "w2": jnp.stack([per_cpmb_w(l, "w2") for l in layers]
                        ).astype(jnp.bfloat16),
        "b2": jnp.stack([per_cpmb_b(l, "b2") for l in layers]),
        "tail_w": jnp.stack([_conv_w_to_mat(l["tail_w"]) for l in layers]
                            ).astype(jnp.bfloat16),                           # [L,1,9nf]
        "tail_b": jnp.stack([l["tail_b"].reshape(1, 1) for l in layers]),     # [L,1,1]
        "lambda": jnp.stack([l["lambda"] for l in layers]),                   # [L]
    }


# --------------------------------------------------------------------------
# R_COAST driver
# --------------------------------------------------------------------------

class RCoastPallas:
    def __init__(self, LayerNo, feedback, IPL, block_size=(33, 33), key=None):
        if key is None:
            key = jax.random.PRNGKey(0)
        self.LayerNo = LayerNo
        self.feedback = feedback
        self.IPL = IPL
        self.block_size = block_size
        fb = [1] * LayerNo                        # matches reference __init__
        feedback_max = ([fb[0] * IPL] + [f * IPL for f in fb[1:-1]]
                        + [fb[-1] * IPL])
        self.max_iter = sum(feedback_max)
        raw = init_params(key, LayerNo)
        self.mlp = {"w1": raw["mlp_w1"], "b1": raw["mlp_b1"],
                    "w2": raw["mlp_w2"], "b2": raw["mlp_b2"]}
        self.stacked = stack_layer_params(raw["layers"])
        assert len(feedback) == LayerNo

    def get_cond(self, cs_ratio, total_recursions, cur_recursion):
        return jnp.array([[cs_ratio / 100.0 * 2,
                           total_recursions / self.max_iter,
                           cur_recursion / self.max_iter]], jnp.float32)

    def forward(self, x_input, Phi, block_size=None, feedback=None):
        if feedback is None:
            feedback = self.feedback
        else:
            assert len(feedback) == self.LayerNo
        if block_size is None:
            block_size = self.block_size

        N, C, H, W = x_input.shape
        assert N == 1 and C == 1, "driver assumes a single 1-channel image"
        bh, bw = block_size
        assert H % bh == 0 and W % bw == 0
        nbh, nbw = H // bh, W // bw
        nb = nbh * nbw
        Npix = bh * bw
        Npad = 128 * pl.cdiv(Npix, 128)           # lane-aligned block vectors
        Hp, Wp = H + 2, W + 2
        Lp = Hp * Wp

        # one-time glue: blockify + vectorize + lane-pad the input
        xb = jnp.transpose(x_input[0, 0].reshape(nbh, bh, nbw, bw),
                           (0, 2, 1, 3)).reshape(nb, Npix)
        batch_x = jnp.pad(xb, ((0, 0), (0, Npad - Npix)))
        Phi_pad = jnp.pad(Phi, ((0, 0), (0, Npad - Npix)))
        cs_ratio = Phi.shape[0] / Phi.shape[1] * 100

        # one Pallas call: PhiTPhi, PhiTb (no HBM Phi.T)
        PhiTPhi, PhiTb = cs_setup(batch_x, Phi_pad)

        # batched residual-scale MLP: all iterations at once
        total_iter = sum(feedback)
        conds = jnp.concatenate(
            [self.get_cond(cs_ratio, total_iter, it + 1)
             for it in range(total_iter)], axis=0)                # [T, 3]
        alphas = res_scale_mlp(conds, self.mlp["w1"], self.mlp["b1"],
                               self.mlp["w2"], self.mlp["b2"])    # [T, nf]
        alphas = alphas[:, :, None]                               # [T, nf, 1]

        # per-iteration layer ids (scalar prefetch) and lambdas
        ids = []
        for i, rec in enumerate(feedback):
            ids.extend([i] * rec)
        layer_ids = jnp.asarray(ids, jnp.int32)                   # [T]
        lambdas = self.stacked["lambda"][layer_ids][:, None, None]  # [T,1,1]

        # interior mask of the padded image (constant per geometry)
        yy = jnp.arange(Hp)[:, None]
        xx = jnp.arange(Wp)[None, :]
        mask = (((yy >= 1) & (yy <= H) & (xx >= 1) & (xx <= W))
                .astype(jnp.float32).reshape(1, Lp))

        # ONE fused Pallas call over all iterations
        preds = run_coast_iterations(
            layer_ids, PhiTPhi, PhiTb, lambdas, alphas, mask, self.stacked,
            H=H, W=W, bh=bh, bw=bw)                               # [T, 1, Lp]
        preds = preds.reshape(total_iter, Hp, Wp)[:, 1:H + 1, 1:W + 1]

        outputs = [[] for _ in range(self.LayerNo)]
        it = 0
        out = None
        for i, rec in enumerate(feedback):
            for _ in range(rec):
                out = preds[it][None, None]                       # [1,1,H,W]
                outputs[i].append(out)
                it += 1
        if outputs[-1]:
            outputs[-1][-1] = out
        else:
            outputs[-1].append(out)
        return outputs


if __name__ == "__main__":
    key = jax.random.PRNGKey(0)
    k_img, k_phi, k_par = jax.random.split(key, 3)

    H = W = 16
    block_size = (8, 8)                      # 64 pixels per block, 4 blocks
    x_input = jax.random.normal(k_img, (1, 1, H, W), jnp.float32)   # NCHW
    M, Npix = 16, block_size[0] * block_size[1]                     # cs 25%
    Phi = jax.random.normal(k_phi, (M, Npix), jnp.float32) / jnp.sqrt(Npix)

    model = RCoastPallas(LayerNo=2, feedback=[1, 1], IPL=1,
                         block_size=block_size, key=k_par)
    outputs = model.forward(x_input, Phi)
    jax.block_until_ready(outputs[-1][-1])
    assert outputs[-1][-1].shape == (1, 1, H, W)
    print("KERNEL_OK")
</pallas_src>

<mosaic_0001>
module attributes {stable_mosaic.version = 11 : i64} {
  func.func @_setup_kernel(%arg0: memref<4x128xf32, #tpu.memory_space<vmem>>, %arg1: memref<16x128xf32, #tpu.memory_space<vmem>>, %arg2: memref<128x128xf32, #tpu.memory_space<vmem>>, %arg3: memref<4x128xf32, #tpu.memory_space<vmem>>) attributes {dimension_semantics = [], scalar_prefetch = 0 : i64, scratch_operands = 0 : i64, tpu.core_type = #tpu.core_type<tc>} {
    %c0 = arith.constant 0 : index
    %c0_0 = arith.constant 0 : index
    %0 = vector.load %arg1[%c0, %c0_0] : memref<16x128xf32, #tpu.memory_space<vmem>>, vector<16x128xf32>
    %1 = tpu.transpose %0, [1, 0] : vector<16x128xf32> -> vector<128x16xf32>
    %c0_1 = arith.constant 0 : index
    %c0_2 = arith.constant 0 : index
    %2 = vector.load %arg0[%c0_1, %c0_2] : memref<4x128xf32, #tpu.memory_space<vmem>>, vector<4x128xf32>
    %cst = arith.constant dense<0.000000e+00> : vector<4x16xf32>
    %3 = tpu.matmul %2, %1, %cst {dimension_numbers = #tpu.dot_dimension_numbers<[1], [0], [0], [1], [0, 0, 1, 1], [], []>} : vector<4x128xf32>, vector<128x16xf32>, vector<4x16xf32> -> vector<4x16xf32>
    %cst_3 = arith.constant dense<0.000000e+00> : vector<128x128xf32>
    %4 = tpu.matmul %1, %0, %cst_3 {dimension_numbers = #tpu.dot_dimension_numbers<[1], [0], [0], [1], [0, 0, 1, 1], [], []>} : vector<128x16xf32>, vector<16x128xf32>, vector<128x128xf32> -> vector<128x128xf32>
    %c0_4 = arith.constant 0 : index
    %c0_5 = arith.constant 0 : index
    %5 = vector.load %arg2[%c0_4, %c0_5] : memref<128x128xf32, #tpu.memory_space<vmem>>, vector<128x128xf32>
    tpu.vector_store %arg2[%c0_4, %c0_5], %4 {strides = array<i32>} : memref<128x128xf32, #tpu.memory_space<vmem>>, vector<128x128xf32>,
    %cst_6 = arith.constant dense<0.000000e+00> : vector<4x128xf32>
    %6 = tpu.matmul %3, %0, %cst_6 {dimension_numbers = #tpu.dot_dimension_numbers<[1], [0], [0], [1], [0, 0, 1, 1], [], []>} : vector<4x16xf32>, vector<16x128xf32>, vector<4x128xf32> -> vector<4x128xf32>
    %c0_7 = arith.constant 0 : index
    %c0_8 = arith.constant 0 : index
    %7 = vector.load %arg3[%c0_7, %c0_8] : memref<4x128xf32, #tpu.memory_space<vmem>>, vector<4x128xf32>
    tpu.vector_store %arg3[%c0_7, %c0_8], %6 {strides = array<i32>} : memref<4x128xf32, #tpu.memory_space<vmem>>, vector<4x128xf32>,
    return
  }
}

</mosaic_0001>

<llo_original>
// kernel: cs_setup.1
$region0: #{cs_setup.1}
  #allocation0 [shape = 'u32[]', space=smem, size = 0x4, offset = 0x4, fixed_abs, tag = 'smem constant byte address 0x4 - core index']
  #allocation1 [shape = 'u32[72,128]{1,0:T(1,128)}', space=vmem, size = 0x9000, scoped, tag = 'internal scratch']
  %s0 = inlined_call_operand.hbm [shape: f32[4,128], index: 0, kind: input, shape index: {}]
  %s1 = inlined_call_operand.hbm [shape: f32[16,128], index: 1, kind: input, shape index: {}]
  %s2 = inlined_call_operand.hbm [shape: f32[128,128], index: 2, kind: output, shape index: {0}]
  %s3 = inlined_call_operand.hbm [shape: f32[4,128], index: 3, kind: output, shape index: {1}]
  %4 = xla_tuple %s2, %s3
  %s5 = sld [smem:[#allocation0]]
  $region34: #{cs_setup.1} parent=0
    _
  %s7 = ssub.s32 1, %s5
  %s8 = scalar_select 0, %s7, %s5
  $region1: #{cs_setup.1} parent=0
    #allocation2 [shape = 'u8[2048]{0}', space=vmem, size = 0x800, scoped, tag = 'input window, operand 0, single buffered']
    #allocation3 [shape = 's32[1]{0}', space=sflag, size = 0x4, scoped, tag = 'scoped memory for cs_setup.1']
    #allocation4 [shape = 's32[1]{0}', space=sflag, size = 0x4, scoped, tag = 'scoped memory for cs_setup.1']
    #allocation5 [shape = 'u8[8192]{0}', space=vmem, size = 0x2000, scoped, tag = 'input window, operand 1, single buffered']
    #allocation6 [shape = 's32[1]{0}', space=sflag, size = 0x4, scoped, tag = 'scoped memory for cs_setup.1']
    #allocation7 [shape = 'u8[65536]{0}', space=vmem, size = 0x10000, scoped, tag = 'output window, operand 0, single buffered']
    #allocation8 [shape = 'u8[2048]{0}', space=vmem, size = 0x800, scoped, tag = 'output window, operand 1, single buffered']
    #allocation9 [shape = 's32[1]{0}', space=sflag, size = 0x4, scoped, tag = 'scoped memory for cs_setup.1']
    %9 = vsyncpa [#allocation3], 0
    %10 = vsyncpa [#allocation6], 0
    %11 = vsyncpa [#allocation4], 0
    %12 = vsyncpa [#allocation9], 0
    // Predicated region
    $region2: #{cs_setup.1} parent=1 // pred_check
      _
    $region3: #{cs_setup.1} parent=1 // pred_check_branch
      %14 = sbr.rel (0) target = $region5
    $region4: #{cs_setup.1} parent=1 // pred_region
      %16 = vsyncadd [#allocation3], 0
      %s18 = sshll.u32 %s0, 4
      %s19 = int_to_ptr.hbm [resolvable:$true] %s18
      %s20 = sshll.u32 [#allocation2], 4
      %s21 = int_to_ptr.vmem [resolvable:$true] %s20
      %23 = dma.hbm_to_vmem [thread:$0]  %s19, 64, %s21, [#allocation3]
    $region5: #{cs_setup.1} parent=1 // pred_fallthru
      _
    // Predicated region
    $region6: #{cs_setup.1} parent=1 // pred_check
      _
    $region7: #{cs_setup.1} parent=1 // pred_check_branch
      %25 = sbr.rel (0) target = $region9
    $region8: #{cs_setup.1} parent=1 // pred_region
      %27 = vsyncadd [#allocation6], 0
      %s28 = sshll.u32 %s1, 4
      %s29 = int_to_ptr.hbm [resolvable:$true] %s28
      %s30 = sshll.u32 [#allocation5], 4
      %s31 = int_to_ptr.vmem [resolvable:$true] %s30
      %36 = dma.hbm_to_vmem [thread:$0]  %s29, 256, %s31, [#allocation6], 128, 128, 8
    $region9: #{cs_setup.1} parent=1 // pred_fallthru
      _
    // Predicated region
    $region10: #{cs_setup.1} parent=1 // pred_check
      _
    $region11: #{cs_setup.1} parent=1 // pred_check_branch
      %38 = sbr.rel (0) target = $region13
    $region12: #{cs_setup.1} parent=1 // pred_region
      %40 = dma.done [#allocation3], 64
    $region13: #{cs_setup.1} parent=1 // pred_fallthru
      _
    // Predicated region
    $region14: #{cs_setup.1} parent=1 // pred_check
      _
    $region15: #{cs_setup.1} parent=1 // pred_check_branch
      %42 = sbr.rel (0) target = $region17
    $region16: #{cs_setup.1} parent=1 // pred_region
      %44 = dma.done [#allocation6], 256
    $region17: #{cs_setup.1} parent=1 // pred_fallthru
      _
    %v45 = vld [vmem:[#allocation5] sm:$0xff]
    %v46 = vld [vmem:[#allocation5 + $0x8] sm:$0xff]
    %47 = vxpose.xlu0.b32.start [1/16] %v45, 128
    %48 = vxpose.xlu0.b32.cont [2/16] %v46, 128
    %49 = vxpose.xlu0.b32.cont [3/16] 0.0, 128
    %50 = vxpose.xlu0.b32.cont [4/16] 0.0, 128
    %51 = vxpose.xlu0.b32.cont [5/16] 0.0, 128
    %52 = vxpose.xlu0.b32.cont [6/16] 0.0, 128
    %53 = vxpose.xlu0.b32.cont [7/16] 0.0, 128
    %54 = vxpose.xlu0.b32.cont [8/16] 0.0, 128
    %55 = vxpose.xlu0.b32.cont [9/16] 0.0, 128
    %56 = vxpose.xlu0.b32.cont [10/16] 0.0, 128
    %57 = vxpose.xlu0.b32.cont [11/16] 0.0, 128
    %58 = vxpose.xlu0.b32.cont [12/16] 0.0, 128
    %59 = vxpose.xlu0.b32.cont [13/16] 0.0, 128
    %60 = vxpose.xlu0.b32.cont [14/16] 0.0, 128
    %61 = vxpose.xlu0.b32.cont [15/16] 0.0, 128
    %62 = vxpose.xlu0.b32.end [16/16] 0.0, 128
    %v63 = vpop.trf.xlu0
    %v64 = vpop.trf.xlu0
    %v65 = vpop.trf.xlu0
    %v66 = vpop.trf.xlu0
    %v67 = vpop.trf.xlu0
    %v68 = vpop.trf.xlu0
    %v69 = vpop.trf.xlu0
    %v70 = vpop.trf.xlu0
    %v71 = vpop.trf.xlu0
    %v72 = vpop.trf.xlu0
    %v73 = vpop.trf.xlu0
    %v74 = vpop.trf.xlu0
    %v75 = vpop.trf.xlu0
    %v76 = vpop.trf.xlu0
    %v77 = vpop.trf.xlu0
    %v78 = vpop.trf.xlu0
    %v79 = vld [vmem:[#allocation2] sm:$0xf]
    %80 = vmatpush.msra.mxu0 %v78
    %81 = vmatpush.msra.mxu0 %v77
    %82 = vmatpush.msra.mxu0 %v76
    %83 = vmatpush.msra.mxu0 %v75
    %84 = vmatpush.msra.mxu0 %v74
    %85 = vmatpush.msra.mxu0 %v73
    %86 = vmatpush.msra.mxu0 %v72
    %87 = vmatpush.msra.mxu0 %v71
    %88 = vmatpush.msra.mxu0 %v70
    %89 = vmatpush.msra.mxu0 %v69
    %90 = vmatpush.msra.mxu0 %v68
    %91 = vmatpush.msra.mxu0 %v67
    %92 = vmatpush.msra.mxu0 %v66
    %93 = vmatpush.msra.mxu0 %v65
    %94 = vmatpush.msra.mxu0 %v64
    %95 = vmatpush.msra.mxu0 %v63
    %96 = vmatmul.f32.gmra.mxu0 %v79
    %v97 = vpop.f32.mrf.mxu0
    %v98 = vadd.f32 0.0, %v97
    %99 = vdwg.mxu0
    %vm100 = vcmask 130048
    %v102 = vsel %vm100, %v63, 0
    %v105 = vsel %vm100, %v64, 0
    %v108 = vsel %vm100, %v65, 0
    %v111 = vsel %vm100, %v66, 0
    %v114 = vsel %vm100, %v67, 0
    %v117 = vsel %vm100, %v68, 0
    %v120 = vsel %vm100, %v69, 0
    %v123 = vsel %vm100, %v70, 0
    %v126 = vsel %vm100, %v71, 0
    %v129 = vsel %vm100, %v72, 0
    %v132 = vsel %vm100, %v73, 0
    %v135 = vsel %vm100, %v74, 0
    %v138 = vsel %vm100, %v75, 0
    %v141 = vsel %vm100, %v76, 0
    %v144 = vsel %vm100, %v77, 0
    %v147 = vsel %vm100, %v78, 0
    %149 = vmatpush.msra.mxu0 0.0
    %150 = vmatpush.msra.mxu0 0.0
    %151 = vmatpush.msra.mxu0 0.0
    %152 = vmatpush.msra.mxu0 0.0
    %153 = vmatpush.msra.mxu0 0.0
    %154 = vmatpush.msra.mxu0 0.0
    %155 = vmatpush.msra.mxu0 0.0
    %156 = vmatpush.msra.mxu0 0.0
    %157 = vmatpush.msra.mxu0 0.0
    %158 = vmatpush.msra.mxu0 0.0
    %159 = vmatpush.msra.mxu0 0.0
    %160 = vmatpush.msra.mxu0 0.0
    %161 = vmatpush.msra.mxu0 0.0
    %162 = vmatpush.msra.mxu0 0.0
    %163 = vmatpush.msra.mxu0 %v46
    %164 = vmatpush.msra.mxu0 %v45
    %165 = vmatmul.f32.gmra.mxu0 %v102
    %v166 = vpop.f32.mrf.mxu0
    %v167 = vadd.f32 0.0, %v166
    %168 = vmatmul.f32.gmra.mxu0 %v105
    %v169 = vpop.f32.mrf.mxu0
    %v170 = vadd.f32 0.0, %v169
    %171 = vmatmul.f32.gmra.mxu0 %v108
    %v172 = vpop.f32.mrf.mxu0
    %v173 = vadd.f32 0.0, %v172
    %174 = vmatmul.f32.gmra.mxu0 %v111
    %v175 = vpop.f32.mrf.mxu0
    %v176 = vadd.f32 0.0, %v175
    %177 = vmatmul.f32.gmra.mxu0 %v114
    %v178 = vpop.f32.mrf.mxu0
    %v179 = vadd.f32 0.0, %v178
    %180 = vmatmul.f32.gmra.mxu0 %v117
    %v181 = vpop.f32.mrf.mxu0
    %v182 = vadd.f32 0.0, %v181
    %183 = vmatmul.f32.gmra.mxu0 %v120
    %v184 = vpop.f32.mrf.mxu0
    %v185 = vadd.f32 0.0, %v184
    %186 = vmatmul.f32.gmra.mxu0 %v123
    %v187 = vpop.f32.mrf.mxu0
    %v188 = vadd.f32 0.0, %v187
    %189 = vmatmul.f32.gmra.mxu0 %v126
    %v190 = vpop.f32.mrf.mxu0
    %v191 = vadd.f32 0.0, %v190
    %192 = vmatmul.f32.gmra.mxu0 %v129
    %v193 = vpop.f32.mrf.mxu0
    %v194 = vadd.f32 0.0, %v193
    %195 = vmatmul.f32.gmra.mxu0 %v132
    %v196 = vpop.f32.mrf.mxu0
    %v197 = vadd.f32 0.0, %v196
    %198 = vmatmul.f32.gmra.mxu0 %v135
    %v199 = vpop.f32.mrf.mxu0
    %v200 = vadd.f32 0.0, %v199
    %201 = vmatmul.f32.gmra.mxu0 %v138
    %v202 = vpop.f32.mrf.mxu0
    %v203 = vadd.f32 0.0, %v202
    %204 = vmatmul.f32.gmra.mxu0 %v141
    %v205 = vpop.f32.mrf.mxu0
    %v206 = vadd.f32 0.0, %v205
    %207 = vmatmul.f32.gmra.mxu0 %v144
    %v208 = vpop.f32.mrf.mxu0
    %v209 = vadd.f32 0.0, %v208
    %210 = vmatmul.f32.gmra.mxu0 %v147
    %v211 = vpop.f32.mrf.mxu0
    %v212 = vadd.f32 0.0, %v211
    %213 = vdwg.mxu0
    %214 = vst [vmem:[#allocation7] sm:$0xff] %v167
    %215 = vst [vmem:[#allocation7 + $0x8] sm:$0xff] %v170
    %216 = vst [vmem:[#allocation7 + $0x10] sm:$0xff] %v173
    %217 = vst [vmem:[#allocation7 + $0x18] sm:$0xff] %v176
    %218 = vst [vmem:[#allocation7 + $0x20] sm:$0xff] %v179
    %219 = vst [vmem:[#allocation7 + $0x28] sm:$0xff] %v182
    %220 = vst [vmem:[#allocation7 + $0x30] sm:$0xff] %v185
    %221 = vst [vmem:[#allocation7 + $0x38] sm:$0xff] %v188
    %222 = vst [vmem:[#allocation7 + $0x40] sm:$0xff] %v191
    %223 = vst [vmem:[#allocation7 + $0x48] sm:$0xff] %v194
    %224 = vst [vmem:[#allocation7 + $0x50] sm:$0xff] %v197
    %225 = vst [vmem:[#allocation7 + $0x58] sm:$0xff] %v200
    %226 = vst [vmem:[#allocation7 + $0x60] sm:$0xff] %v203
    %227 = vst [vmem:[#allocation7 + $0x68] sm:$0xff] %v206
    %228 = vst [vmem:[#allocation7 + $0x70] sm:$0xff] %v209
    %229 = vst [vmem:[#allocation7 + $0x78] sm:$0xff] %v212
    %v231 = vsel %vm100, %v98, 0
    %233 = vmatpush.msra.mxu0 0.0
    %234 = vmatpush.msra.mxu0 0.0
    %235 = vmatpush.msra.mxu0 0.0
    %236 = vmatpush.msra.mxu0 0.0
    %237 = vmatpush.msra.mxu0 0.0
    %238 = vmatpush.msra.mxu0 0.0
    %239 = vmatpush.msra.mxu0 0.0
    %240 = vmatpush.msra.mxu0 0.0
    %241 = vmatpush.msra.mxu0 0.0
    %242 = vmatpush.msra.mxu0 0.0
    %243 = vmatpush.msra.mxu0 0.0
    %244 = vmatpush.msra.mxu0 0.0
    %245 = vmatpush.msra.mxu0 0.0
    %246 = vmatpush.msra.mxu0 0.0
    %247 = vmatpush.msra.mxu0 %v46
    %248 = vmatpush.msra.mxu0 %v45
    %249 = vmatmul.f32.gmra.mxu0 %v231
    %v250 = vpop.f32.mrf.mxu0
    %v251 = vadd.f32 0.0, %v250
    %252 = vdwg.mxu0
    %253 = vst [vmem:[#allocation8] sm:$0xf] %v251
    // Predicated region
    $region18: #{cs_setup.1} parent=1 // pred_check
      _
    $region19: #{cs_setup.1} parent=1 // pred_check_branch
      %255 = sbr.rel (0) target = $region21
    $region20: #{cs_setup.1} parent=1 // pred_region
      %257 = vsyncadd [#allocation4], 0
      %s258 = sshll.u32 [#allocation7], 4
      %s259 = int_to_ptr.vmem [resolvable:$true] %s258
      %s260 = sshll.u32 %s2, 4
      %s261 = int_to_ptr.hbm [resolvable:$true] %s260
      %266 = dma.vmem_to_hbm [thread:$0]  %s259, 2048, %s261, [#allocation4], 128, 128, 8
    $region21: #{cs_setup.1} parent=1 // pred_fallthru
      _
    // Predicated region
    $region22: #{cs_setup.1} parent=1 // pred_check
      _
    $region23: #{cs_setup.1} parent=1 // pred_check_branch
      %268 = sbr.rel (0) target = $region25
    $region24: #{cs_setup.1} parent=1 // pred_region
      %270 = vsyncadd [#allocation9], 0
      %s272 = sshll.u32 [#allocation8], 4
      %s273 = int_to_ptr.vmem [resolvable:$true] %s272
      %s274 = sshll.u32 %s3, 4
      %s275 = int_to_ptr.hbm [resolvable:$true] %s274
      %277 = dma.vmem_to_hbm [thread:$0]  %s273, 64, %s275, [#allocation9]
    $region25: #{cs_setup.1} parent=1 // pred_fallthru
      _
    // Predicated region
    $region26: #{cs_setup.1} parent=1 // pred_check
      _
    $region27: #{cs_setup.1} parent=1 // pred_check_branch
      %279 = sbr.rel (0) target = $region29
    $region28: #{cs_setup.1} parent=1 // pred_region
      %281 = dma.done [#allocation4], 2048
    $region29: #{cs_setup.1} parent=1 // pred_fallthru
      _
    // Predicated region
    $region30: #{cs_setup.1} parent=1 // pred_check
      _
    $region31: #{cs_setup.1} parent=1 // pred_check_branch
      %283 = sbr.rel (0) target = $region33
    $region32: #{cs_setup.1} parent=1 // pred_region
      %285 = dma.done [#allocation9], 64
    $region33: #{cs_setup.1} parent=1 // pred_fallthru
      _
    %286 = vsyncpa [#allocation3], 1
    %287 = vsyncpa [#allocation6], 1
    %288 = vsyncpa [#allocation4], 1
    %289 = vsyncpa [#allocation9], 1

</llo_original>
